<compile_context>
chip_gen: v7x
topology: tpu7x:2x2x1
jax: 0.10.0
libtpu: 0.0.40
codegen_flags: <defaults>
</compile_context>

<pallas_src>
import jax
import jax.numpy as jnp
from jax import lax
from jax.experimental import pallas as pl
from jax.experimental.pallas import tpu as pltpu

N_EMBD = 60        # C in the reference module
BLOCK_SIZE = 128   # max sequence length supported by the causal mask


def _head_kernel(x_ref, wqkv_ref, bias_ref, o_ref, qkv_ref):
    """One grid step = BB batch elements; full T x T attention per batch row."""
    BB, T, C = x_ref.shape
    H3 = wqkv_ref.shape[1]
    H = H3 // 3

    # ---- fused QKV projection: one MXU stream with M = BB*T, N = 3H ----------
    # The (BB*T, 3H) result is staged through a bf16 VMEM scratch so the
    # attention loop below never holds more than one (T, T) logits tile in vregs.
    x2d = x_ref[...].reshape(BB * T, C).astype(jnp.bfloat16)
    qkv = jnp.dot(x2d, wqkv_ref[...], preferred_element_type=jnp.float32)
    qkv_ref[...] = qkv.astype(jnp.bfloat16).reshape(BB, T, H3)

    def _attend(b, carry):
        qkv_b = qkv_ref[b]                        # (T, 3H) bf16 from VMEM scratch
        q = qkv_b[:, 0 * H:1 * H]                 # 1/sqrt(C) already folded into Wq
        k = qkv_b[:, 1 * H:2 * H]
        v = qkv_b[:, 2 * H:3 * H]

        # logits: q @ k^T, contracting on H directly (no explicit transpose)
        s = lax.dot_general(q, k, (((1,), (1,)), ((), ())),
                            preferred_element_type=jnp.float32)   # (T, T) f32

        # causal additive bias (resident bf16 -> promotes to f32 on add)
        wei = s + bias_ref[...]

        # numerically stable softmax over the key axis (f32), EUP reciprocal
        m = jnp.max(wei, axis=-1, keepdims=True)
        p = jnp.exp(wei - m)
        denom = jnp.sum(p, axis=-1, keepdims=True)
        p = p * pl.reciprocal(denom, approx=True)

        # Dropout(p=0.0) is the identity — skipped.

        out = jnp.dot(p.astype(jnp.bfloat16), v,
                      preferred_element_type=jnp.float32)         # (T, H) f32
        o_ref[b] = out.astype(o_ref.dtype)
        return carry

    lax.fori_loop(0, BB, _attend, 0)


def head_forward(x, wk, wq, wv, *, batch_block=16):
    """Single-head causal self-attention.

    x: (B, T, C), f32 or bf16 (bf16 halves the dominant HBM read);
    wk/wq/wv: (C, H) f32 — already-transposed nn.Linear weights.
    Returns (B, T, H) f32, matching the PyTorch `Head.forward`.
    """
    B, T, C = x.shape
    H = wq.shape[1]
    assert C == N_EMBD and T <= BLOCK_SIZE

    # Batch block: as large as requested, but capped at cdiv(B, 2) so there are
    # always >= 2 grid steps (keeps both v7x TensorCores busy).  The tail block
    # (when BB does not divide B) is handled by Pallas partial-block masking.
    BB = min(batch_block, B)
    if B >= 2:
        BB = min(BB, pl.cdiv(B, 2))
    BB = max(BB, 1)
    grid = (pl.cdiv(B, BB),)

    # Fused (C, 3H) projection weight in bf16, order (q, k, v); the reference
    # scales logits by C**-0.5 (n_embd, NOT head_size) — fold it into Wq here.
    scale = jnp.float32(C) ** jnp.float32(-0.5)
    w_qkv = jnp.concatenate([wq * scale, wk, wv], axis=1).astype(jnp.bfloat16)

    # Causal additive bias: 0 where col <= row, large-negative otherwise (bf16).
    row = lax.broadcasted_iota(jnp.int32, (T, T), 0)
    col = lax.broadcasted_iota(jnp.int32, (T, T), 1)
    bias = jnp.where(col <= row, 0.0, -1e30).astype(jnp.bfloat16)

    return pl.pallas_call(
        _head_kernel,
        out_shape=jax.ShapeDtypeStruct((B, T, H), jnp.float32),
        grid_spec=pltpu.PrefetchScalarGridSpec(
            num_scalar_prefetch=0,
            grid=grid,
            in_specs=[
                pl.BlockSpec((BB, T, C), lambda b: (b, 0, 0)),    # x, BB batch rows
                pl.BlockSpec((C, 3 * H), lambda b: (0, 0)),       # fused W_qkv (resident)
                pl.BlockSpec((T, T), lambda b: (0, 0)),           # causal bias (resident)
            ],
            out_specs=pl.BlockSpec((BB, T, H), lambda b: (b, 0, 0)),
            scratch_shapes=[pltpu.VMEM((BB, T, 3 * H), jnp.bfloat16)],
        ),
        compiler_params=pltpu.CompilerParams(
            dimension_semantics=("parallel",),
        ),
    )(x, w_qkv, bias)


def _reference(x, wk, wq, wv):
    """Pure-JAX f32 reference mirroring the PyTorch forward."""
    B, T, C = x.shape
    k = x @ wk
    q = x @ wq
    v = x @ wv
    wei = (q @ jnp.swapaxes(k, -2, -1)) * (C ** -0.5)
    tril = jnp.tril(jnp.ones((T, T)))
    wei = jnp.where(tril == 0, -jnp.inf, wei)
    wei = jax.nn.softmax(wei, axis=-1)
    return wei @ v


if __name__ == "__main__":
    head_size = 16
    C = N_EMBD

    def make_inputs(key, B, T):
        kx, kk, kq, kv = jax.random.split(key, 4)
        x = jax.random.normal(kx, (B, T, C), dtype=jnp.float32)
        s = 1.0 / jnp.sqrt(jnp.float32(C))
        wk = jax.random.uniform(kk, (C, head_size), jnp.float32, -s, s)
        wq = jax.random.uniform(kq, (C, head_size), jnp.float32, -s, s)
        wv = jax.random.uniform(kv, (C, head_size), jnp.float32, -s, s)
        return x, wk, wq, wv

    # Small canonical shape from the module: B=2, T=8, C=60, H=16 (grid of 2).
    x, wk, wq, wv = make_inputs(jax.random.PRNGKey(0), B=2, T=8)
    out = jax.block_until_ready(head_forward(x, wk, wq, wv))
    ref = _reference(x, wk, wq, wv)
    assert out.shape == (2, 8, head_size)
    # bf16 MXU inputs (f32 accumulation) + approx reciprocal => looser tolerance.
    assert jnp.allclose(out, ref, atol=2e-2, rtol=2e-2), "mismatch vs reference"

    # Odd batch: exercises BB > 1, >= 2 grid steps, and the masked tail block.
    x2, wk2, wq2, wv2 = make_inputs(jax.random.PRNGKey(1), B=5, T=16)
    out2 = jax.block_until_ready(head_forward(x2, wk2, wq2, wv2))
    ref2 = _reference(x2, wk2, wq2, wv2)
    assert out2.shape == (5, 16, head_size)
    assert jnp.allclose(out2, ref2, atol=2e-2, rtol=2e-2), "mismatch vs reference (tail)"

    print("KERNEL_OK")
</pallas_src>

<mosaic_0001>
module attributes {stable_mosaic.version = 11 : i64} {
  func.func @_head_kernel(%arg0: i32, %arg1: memref<1x8x60xf32, #tpu.memory_space<vmem>>, %arg2: memref<60x48xbf16, #tpu.memory_space<vmem>>, %arg3: memref<8x8xbf16, #tpu.memory_space<vmem>>, %arg4: memref<1x8x16xf32, #tpu.memory_space<vmem>>, %arg5: memref<1x8x48xbf16, #tpu.memory_space<vmem>>) attributes {dimension_semantics = [#tpu.dimension_semantics<parallel>], iteration_bounds = array<i64: 2>, scalar_prefetch = 0 : i64, scratch_operands = 1 : i64, tpu.core_type = #tpu.core_type<tc>, window_params = [{transform_indices = @transform_0, window_bounds = array<i64: 1, 8, 60>}, {pipeline_mode = #tpu.pipeline_mode<synchronous>, transform_indices = @transform_1, window_bounds = array<i64: 60, 48>}, {pipeline_mode = #tpu.pipeline_mode<synchronous>, transform_indices = @transform_2, window_bounds = array<i64: 8, 8>}, {transform_indices = @transform_3, window_bounds = array<i64: 1, 8, 16>}]} {
    %c0 = arith.constant 0 : index
    %c0_0 = arith.constant 0 : index
    %c0_1 = arith.constant 0 : index
    %0 = vector.load %arg1[%c0, %c0_0, %c0_1] : memref<1x8x60xf32, #tpu.memory_space<vmem>>, vector<1x8x60xf32>
    %1 = vector.shape_cast %0 : vector<1x8x60xf32> to vector<8x60xf32>
    %2 = arith.truncf %1 : vector<8x60xf32> to vector<8x60xbf16>
    %c0_2 = arith.constant 0 : index
    %c0_3 = arith.constant 0 : index
    %3 = vector.load %arg2[%c0_2, %c0_3] : memref<60x48xbf16, #tpu.memory_space<vmem>>, vector<60x48xbf16>
    %cst = arith.constant dense<0.000000e+00> : vector<8x48xf32>
    %4 = tpu.matmul %2, %3, %cst {dimension_numbers = #tpu.dot_dimension_numbers<[1], [0], [0], [1], [0, 0, 1, 1], [], []>} : vector<8x60xbf16>, vector<60x48xbf16>, vector<8x48xf32> -> vector<8x48xf32>
    %5 = arith.truncf %4 : vector<8x48xf32> to vector<8x48xbf16>
    %6 = vector.shape_cast %5 : vector<8x48xbf16> to vector<1x8x48xbf16>
    %c0_4 = arith.constant 0 : index
    %c0_5 = arith.constant 0 : index
    %c0_6 = arith.constant 0 : index
    %7 = vector.load %arg5[%c0_4, %c0_5, %c0_6] : memref<1x8x48xbf16, #tpu.memory_space<vmem>>, vector<1x8x48xbf16>
    tpu.vector_store %arg5[%c0_4, %c0_5, %c0_6], %6 {strides = array<i32>} : memref<1x8x48xbf16, #tpu.memory_space<vmem>>, vector<1x8x48xbf16>,
    %c0_i32 = arith.constant 0 : i32
    %8 = arith.index_cast %c0_i32 : i32 to index
    %c0_7 = arith.constant 0 : index
    %c0_8 = arith.constant 0 : index
    %9 = vector.load %arg5[%8, %c0_7, %c0_8] : memref<1x8x48xbf16, #tpu.memory_space<vmem>>, vector<1x8x48xbf16>
    %10 = vector.shape_cast %9 : vector<1x8x48xbf16> to vector<8x48xbf16>
    %11 = vector.extract_strided_slice %10 {offsets = [0, 0], sizes = [8, 16], strides = [1, 1]} : vector<8x48xbf16> to vector<8x16xbf16>
    %12 = vector.extract_strided_slice %10 {offsets = [0, 16], sizes = [8, 16], strides = [1, 1]} : vector<8x48xbf16> to vector<8x16xbf16>
    %13 = vector.extract_strided_slice %10 {offsets = [0, 32], sizes = [8, 16], strides = [1, 1]} : vector<8x48xbf16> to vector<8x16xbf16>
    %cst_9 = arith.constant dense<0.000000e+00> : vector<8x8xf32>
    %14 = tpu.matmul %11, %12, %cst_9 {dimension_numbers = #tpu.dot_dimension_numbers<[1], [1], [0], [0], [0, 0, 1, 0], [], []>} : vector<8x16xbf16>, vector<8x16xbf16>, vector<8x8xf32> -> vector<8x8xf32>
    %c0_10 = arith.constant 0 : index
    %c0_11 = arith.constant 0 : index
    %15 = vector.load %arg3[%c0_10, %c0_11] : memref<8x8xbf16, #tpu.memory_space<vmem>>, vector<8x8xbf16>
    %16 = arith.extf %15 : vector<8x8xbf16> to vector<8x8xf32>
    %17 = arith.addf %14, %16 : vector<8x8xf32>
    %cst_12 = arith.constant dense<0xFF800000> : vector<8xf32>
    %18 = vector.multi_reduction <maximumf>, %17, %cst_12 [1] : vector<8x8xf32> to vector<8xf32>
    %19 = vector.shape_cast %18 : vector<8xf32> to vector<8x1xf32>
    %20 = vector.broadcast %19 : vector<8x1xf32> to vector<8x8xf32>
    %21 = arith.subf %17, %20 : vector<8x8xf32>
    %22 = math.exp %21 : vector<8x8xf32>
    %cst_13 = arith.constant dense<0.000000e+00> : vector<8xf32>
    %23 = vector.multi_reduction <add>, %22, %cst_13 [1] : vector<8x8xf32> to vector<8xf32>
    %24 = vector.shape_cast %23 : vector<8xf32> to vector<8x1xf32>
    %25 = tpu.reciprocal %24 {approx = true} : vector<8x1xf32> -> vector<8x1xf32>
    %26 = vector.broadcast %25 : vector<8x1xf32> to vector<8x8xf32>
    %27 = arith.mulf %22, %26 : vector<8x8xf32>
    %28 = arith.truncf %27 : vector<8x8xf32> to vector<8x8xbf16>
    %cst_14 = arith.constant dense<0.000000e+00> : vector<8x16xf32>
    %29 = tpu.matmul %28, %13, %cst_14 {dimension_numbers = #tpu.dot_dimension_numbers<[1], [0], [0], [1], [0, 0, 1, 1], [], []>} : vector<8x8xbf16>, vector<8x16xbf16>, vector<8x16xf32> -> vector<8x16xf32>
    %30 = arith.index_cast %c0_i32 : i32 to index
    %c0_15 = arith.constant 0 : index
    %c0_16 = arith.constant 0 : index
    %31 = vector.load %arg4[%30, %c0_15, %c0_16] : memref<1x8x16xf32, #tpu.memory_space<vmem>>, vector<1x8x16xf32>
    %32 = vector.shape_cast %31 : vector<1x8x16xf32> to vector<8x16xf32>
    %33 = vector.shape_cast %29 : vector<8x16xf32> to vector<1x8x16xf32>
    tpu.vector_store %arg4[%30, %c0_15, %c0_16], %33 {strides = array<i32>} : memref<1x8x16xf32, #tpu.memory_space<vmem>>, vector<1x8x16xf32>,
    %c1_i32 = arith.constant 1 : i32
    return
  }
  func.func @transform_0(%arg0: i32) -> (i32, i32, i32) {
    %c0_i32 = arith.constant 0 : i32
    %c0_i32_0 = arith.constant 0 : i32
    %c0_i32_1 = arith.constant 0 : i32
    return %arg0, %c0_i32, %c0_i32_0 : i32, i32, i32
  }
  func.func @transform_1(%arg0: i32) -> (i32, i32) {
    %c0_i32 = arith.constant 0 : i32
    %c0_i32_0 = arith.constant 0 : i32
    %c0_i32_1 = arith.constant 0 : i32
    return %c0_i32, %c0_i32_0 : i32, i32
  }
  func.func @transform_2(%arg0: i32) -> (i32, i32) {
    %c0_i32 = arith.constant 0 : i32
    %c0_i32_0 = arith.constant 0 : i32
    %c0_i32_1 = arith.constant 0 : i32
    return %c0_i32, %c0_i32_0 : i32, i32
  }
  func.func @transform_3(%arg0: i32) -> (i32, i32, i32) {
    %c0_i32 = arith.constant 0 : i32
    %c0_i32_0 = arith.constant 0 : i32
    %c0_i32_1 = arith.constant 0 : i32
    return %arg0, %c0_i32, %c0_i32_0 : i32, i32, i32
  }
}

</mosaic_0001>

<llo_original>
// kernel: tpu_custom_call.1
$region0: #{tpu_custom_call.1}
  #allocation0 [shape = 'u32[]', space=smem, size = 0x4, offset = 0x4, fixed_abs, tag = 'smem constant byte address 0x4 - core index']
  #allocation1 [shape = 'u32[144,128]{1,0:T(1,128)}', space=vmem, size = 0x12000, scoped, tag = 'internal scratch']
  #allocation2 [shape = 'bf16[1,8,48]{2,1,0:T(8,128)(2,1)}', space=vmem, size = 0x800, scoped, tag = 'scratch operand']
  %s0 = inlined_call_operand.vmem [shape: f32[2,8,60], index: 0, kind: input, shape index: {}]
  %s1 = inlined_call_operand.vmem [shape: bf16[60,48], index: 1, kind: input, shape index: {}]
  %s2 = inlined_call_operand.vmem [shape: bf16[8,8], index: 2, kind: input, shape index: {}]
  %s3 = inlined_call_operand.hbm [shape: f32[2,8,16], index: 3, kind: output, shape index: {}]
  %s4 = sld [smem:[#allocation0]]
  $region45: #{tpu_custom_call.1} parent=0
    _
  %s6 = ssub.s32 1, %s4
  %s7 = scalar_select 0, %s6, %s4
  $region1: #{tpu_custom_call.1} parent=0
    #allocation3 [shape = 'u8[8192]{0}', space=vmem, size = 0x2000, scoped, tag = 'output window, operand 0']
    #allocation4 [shape = 's32[2]{0}', space=sflag, size = 0x8, scoped, tag = 'scoped memory for tpu_custom_call.1']
    %8 = vsyncpa [#allocation4], 0
    %s9 = scalar_lea.sflag [#allocation4], 1
    %10 = vsyncpa %s9, 0
    loop: start=0, step=1, limit=4
    $region2: #{tpu_custom_call.1} parent=1 // loop_pre_header
      _
    $region3: #{tpu_custom_call.1} parent=1 // loop_header
      %s12 = sphi 0, %s16
      %p13 = scmp.ge.s32.totalorder %s12, 4
      %s22 = sphi 0, %s24
      %s25 = sphi 0, %s22
      %s26 = sphi 0, %s25
      %s42 = sphi 0, %s26
      %s46 = sphi 0, %s46
      %s48 = sphi 0, %s46
      %s49 = sphi 0, %s48
      %s63 = sphi 0, %s49
      %s67 = sphi 0, %s67
      %s69 = sphi 0, %s67
      %s70 = sphi 0, %s69
      %s84 = sphi 0, %s70
      %s90 = sphi 0, %s92
      %s93 = sphi 0, %s90
      %s94 = sphi 0, %s93
      %s110 = sphi 0, %s94
    $region4: #{tpu_custom_call.1} parent=1 // loop_header_branch
      %15 = sbr.rel (%p13) target = $region8
    $region5: #{tpu_custom_call.1} parent=1 // loop_body
      %s17 = ssub.s32 %s12, 1
      %s18 = ssub.s32 %s12, 2
      %s19 = sadd.s32 %s12, 1
      %s20 = ssub.s32 %s12, %s19
      %p21 = scmp.eq.s32.totalorder %s20, 0
      %s23 = sadd.s32 %s22, 1
      %s24 = scalar_select %p21, %s22, %s23
      %p27 = pneg %p21
      %p28 = scmp.eq.s32.totalorder %s12, 1
      %p29 = por %p27, %p28
      %p30 = scmp.ne.s32.totalorder %s22, %s25
      %p31 = scmp.eq.s32.totalorder %s12, 0
      %p32 = por %p30, %p31
      %p33 = scmp.ne.s32.totalorder %s22, %s25
      %p34 = scmp.eq.s32.totalorder %s17, 1
      %p35 = por %p33, %p34
      %p36 = scmp.ne.s32.totalorder %s25, %s26
      %p37 = scmp.eq.s32.totalorder %s17, 0
      %p38 = por %p36, %p37
      %p39 = scmp.ne.s32.totalorder %s25, %s26
      %p40 = scmp.eq.s32.totalorder %s18, 1
      %p41 = por %p39, %p40
      %p43 = scmp.ne.s32.totalorder %s26, %s42
      %p44 = scmp.eq.s32.totalorder %s18, 0
      %p45 = por %p43, %p44
      %s47 = sadd.s32 %s46, 1
      %p50 = scmp.eq.s32.totalorder %s12, 1
      %p51 = scmp.ne.s32.totalorder %s46, %s48
      %p52 = scmp.eq.s32.totalorder %s12, 0
      %p53 = por %p51, %p52
      %p54 = scmp.ne.s32.totalorder %s46, %s48
      %p55 = scmp.eq.s32.totalorder %s17, 1
      %p56 = por %p54, %p55
      %p57 = scmp.ne.s32.totalorder %s48, %s49
      %p58 = scmp.eq.s32.totalorder %s17, 0
      %p59 = por %p57, %p58
      %p60 = scmp.ne.s32.totalorder %s48, %s49
      %p61 = scmp.eq.s32.totalorder %s18, 1
      %p62 = por %p60, %p61
      %p64 = scmp.ne.s32.totalorder %s49, %s63
      %p65 = scmp.eq.s32.totalorder %s18, 0
      %p66 = por %p64, %p65
      %s68 = sadd.s32 %s67, 1
      %p71 = scmp.eq.s32.totalorder %s12, 1
      %p72 = scmp.ne.s32.totalorder %s67, %s69
      %p73 = scmp.eq.s32.totalorder %s12, 0
      %p74 = por %p72, %p73
      %p75 = scmp.ne.s32.totalorder %s67, %s69
      %p76 = scmp.eq.s32.totalorder %s17, 1
      %p77 = por %p75, %p76
      %p78 = scmp.ne.s32.totalorder %s69, %s70
      %p79 = scmp.eq.s32.totalorder %s17, 0
      %p80 = por %p78, %p79
      %p81 = scmp.ne.s32.totalorder %s69, %s70
      %p82 = scmp.eq.s32.totalorder %s18, 1
      %p83 = por %p81, %p82
      %p85 = scmp.ne.s32.totalorder %s70, %s84
      %p86 = scmp.eq.s32.totalorder %s18, 0
      %p87 = por %p85, %p86
      %s88 = ssub.s32 %s12, %s19
      %p89 = scmp.eq.s32.totalorder %s88, 0
      %s91 = sadd.s32 %s90, 1
      %s92 = scalar_select %p89, %s90, %s91
      %p95 = pneg %p89
      %p96 = scmp.eq.s32.totalorder %s12, 1
      %p97 = por %p95, %p96
      %p98 = scmp.ne.s32.totalorder %s90, %s93
      %p99 = scmp.eq.s32.totalorder %s12, 0
      %p100 = por %p98, %p99
      %p101 = scmp.ne.s32.totalorder %s90, %s93
      %p102 = scmp.eq.s32.totalorder %s17, 1
      %p103 = por %p101, %p102
      %p104 = scmp.ne.s32.totalorder %s93, %s94
      %p105 = scmp.eq.s32.totalorder %s17, 0
      %p106 = por %p104, %p105
      %p107 = scmp.ne.s32.totalorder %s93, %s94
      %p108 = scmp.eq.s32.totalorder %s18, 1
      %p109 = por %p107, %p108
      %p111 = scmp.ne.s32.totalorder %s94, %s110
      %p112 = scmp.eq.s32.totalorder %s18, 0
      %p113 = por %p111, %p112
      %p114 = scmp.le.s32.totalorder 1, %s12
      %p115 = scmp.lt.s32.totalorder %s12, 3
      %p116 = pnand %p114, %p115
      %p117 = pneg %p116
      // Predicated region
      $region9: #{tpu_custom_call.1} parent=5 // pred_check
        _
      $region10: #{tpu_custom_call.1} parent=5 // pred_check_branch
        %119 = sbr.rel (%p116) target = $region12
      $region11: #{tpu_custom_call.1} parent=5 // pred_region
        %s120 = ssub.s32 %s12, 1
        // Predicated region
        $region13: #{tpu_custom_call.1} parent=11 // pred_check
          %p121 = pneg %p59
        $region14: #{tpu_custom_call.1} parent=11 // pred_check_branch
          %123 = sbr.rel (%p121) target = $region16
        $region15: #{tpu_custom_call.1} parent=11 // pred_region
          _
        $region16: #{tpu_custom_call.1} parent=11 // pred_fallthru
          _
        // Predicated region
        $region17: #{tpu_custom_call.1} parent=11 // pred_check
          %p124 = pneg %p80
        $region18: #{tpu_custom_call.1} parent=11 // pred_check_branch
          %126 = sbr.rel (%p124) target = $region20
        $region19: #{tpu_custom_call.1} parent=11 // pred_region
          _
        $region20: #{tpu_custom_call.1} parent=11 // pred_fallthru
          _
      $region12: #{tpu_custom_call.1} parent=5 // pred_fallthru
        _
      %p127 = scmp.lt.s32.totalorder %s12, 2
      // Predicated region
      $region21: #{tpu_custom_call.1} parent=5 // pred_check
        %p128 = pneg %p127
      $region22: #{tpu_custom_call.1} parent=5 // pred_check_branch
        %130 = sbr.rel (%p128) target = $region24
      $region23: #{tpu_custom_call.1} parent=5 // pred_region
        // Predicated region
        $region25: #{tpu_custom_call.1} parent=23 // pred_check
          %p131 = pneg %p32
        $region26: #{tpu_custom_call.1} parent=23 // pred_check_branch
          %133 = sbr.rel (%p131) target = $region28
        $region27: #{tpu_custom_call.1} parent=23 // pred_region
          %p134 = scmp.lt.s32.totalorder %s12, 1
          %s135 = scalar_select %p134, %s12, 1
          %s136 = smul.addr %s135, 8
          %s137 = scalar_lea.vmem %s0, %s136
        $region28: #{tpu_custom_call.1} parent=23 // pred_fallthru
          _
      $region24: #{tpu_custom_call.1} parent=5 // pred_fallthru
        _
      %p138 = scmp.le.s32.totalorder 1, %s12
      %p139 = scmp.lt.s32.totalorder %s12, 3
      %p140 = pnand %p138, %p139
      %p141 = pneg %p140
      // Predicated region
      $region29: #{tpu_custom_call.1} parent=5 // pred_check
        _
      $region30: #{tpu_custom_call.1} parent=5 // pred_check_branch
        %143 = sbr.rel (%p140) target = $region32
      $region31: #{tpu_custom_call.1} parent=5 // pred_region
        %s144 = ssub.s32 %s12, 1
        %p145 = scmp.lt.s32.totalorder %s17, 1
        %s146 = scalar_select %p145, %s17, 1
        %s147 = smul.addr %s146, 8
        %s148 = scalar_lea.vmem %s0, %s147
        %p149 = pneg %p38
        %p150 = pneg %p35
        %p151 = pneg %p59
        %p152 = pneg %p56
        %p153 = pneg %p80
        %p154 = pneg %p77
        %p155 = pneg %p106
        %p156 = pneg %p103
        %s157 = sand.u32 %s93, 1
        %s158 = scalar_lea.sflag [#allocation4], %s157
        %s159 = sand.u32 %s93, 1
        %s160 = smul.addr %s159, 8
        %s161 = scalar_lea.vmem [#allocation3], %s160
        %p162 = scmp.lt.s32.totalorder %s17, 1
        %s163 = scalar_select %p162, %s17, 1
        %s164 = smul.addr %s163, 8
        %s165 = scalar_lea.vmem %s0, %s164
        %v167 = vld [vmem:[%s165] sm:$0xff]
        %v168 = vpack.c.bf16 %v167, %v167
        %v169 = vld [vmem:[%s1] sm:$0xf]
        %v170 = vld [vmem:[%s1 + $0x4] sm:$0xf]
        %v171 = vld [vmem:[%s1 + $0x8] sm:$0xf]
        %v172 = vld [vmem:[%s1 + $0xc] sm:$0xf]
        %v173 = vld [vmem:[%s1 + $0x10] sm:$0xf]
        %v174 = vld [vmem:[%s1 + $0x14] sm:$0xf]
        %v175 = vld [vmem:[%s1 + $0x18] sm:$0xf]
        %v176 = vld [vmem:[%s1 + $0x1c] sm:$0x3]
        %v185 = vunpack.c.l.b16 %v169
        %v186 = vunpack.c.l.b16 %v170
        %v187 = vunpack.c.l.b16 %v171
        %v188 = vunpack.c.l.b16 %v172
        %v189 = vunpack.c.l.b16 %v173
        %v190 = vunpack.c.l.b16 %v174
        %v191 = vunpack.c.l.b16 %v175
        %v192 = vunpack.c.l.b16 %v176
        %v193 = vpack.c.b16 %v186, %v185
        %v194 = vpack.c.b16 %v188, %v187
        %v195 = vpack.c.b16 %v190, %v189
        %v196 = vpack.c.b16 %v192, %v191
        %vm200 = vcmask 490496
        %v202 = vsel %vm200, %v168, 0
        %vm204 = vcmask 1045504
        %v206 = vsel %vm204, %v196, 0
        %208 = vmatprep.subr.bf16.mxu0 0
        %209 = vmatpush1.bf16.msra.mxu0 %v193
        %210 = vmatprep.subr.bf16.mxu0 0
        %211 = vmatpush1.bf16.msra.mxu0 %v194
        %212 = vmatprep.subr.bf16.mxu0 0
        %213 = vmatpush1.bf16.msra.mxu0 %v195
        %214 = vmatprep.subr.bf16.mxu0 0
        %215 = vmatpush1.bf16.msra.mxu0 %v206
        %216 = vmatprep.subr.bf16.mxu0 0
        %217 = vmatpush1.bf16.msra.mxu0 0
        %218 = vmatprep.subr.bf16.mxu0 0
        %219 = vmatpush1.bf16.msra.mxu0 0
        %220 = vmatprep.subr.bf16.mxu0 0
        %221 = vmatpush1.bf16.msra.mxu0 0
        %222 = vmatprep.subr.bf16.mxu0 0
        %223 = vmatpush1.bf16.msra.mxu0 0
        %224 = vmatprep.subr.bf16.mxu0 0
        %225 = vmatpush1.bf16.msra.mxu0 0
        %226 = vmatprep.subr.bf16.mxu0 0
        %227 = vmatpush1.bf16.msra.mxu0 0
        %228 = vmatprep.subr.bf16.mxu0 0
        %229 = vmatpush1.bf16.msra.mxu0 0
        %230 = vmatprep.subr.bf16.mxu0 0
        %231 = vmatpush1.bf16.msra.mxu0 0
        %232 = vmatprep.subr.bf16.mxu0 0
        %233 = vmatpush1.bf16.msra.mxu0 0
        %234 = vmatprep.subr.bf16.mxu0 0
        %235 = vmatpush1.bf16.msra.mxu0 0
        %236 = vmatprep.subr.bf16.mxu0 0
        %237 = vmatpush1.bf16.msra.mxu0 0
        %238 = vmatprep.subr.bf16.mxu0 0
        %239 = vmatpush1.bf16.msra.mxu0 0
        %240 = vmatprep.mubr.bf16.mxu0 0
        %241 = vmatmul.mubr.bf16.gmra.mrb[0].mxu0 %v202
        %v242 = vpop.f32.mrb[0].mxu0
        %v243 = vadd.f32 0.0, %v242
        %v244 = vpop.f32.mrb[0].mxu0
        %v245 = vpop.f32.mrb[0].mxu0
        %v246 = vpop.f32.mrb[0].mxu0
        %247 = vdwg.mxu0
        %v248 = vpack.c.bf16 %v243, %v243
        %vm249 = vcmask 388096
        %250 = vst.msk [vmem:[#allocation2] sm:$0xf] %vm249, %v248
        %v251 = vld [vmem:[#allocation2] sm:$0xf]
        %v252 = vld [vmem:[%s2] sm:$0xf]
        %v253 = vunpack.c.l.bf16 %v252
        %v255 = vunpack.c.l.b16 %v251
        %v256 = vpack.c.b16 %v255, %v255
        %257 = vrot.lane.b32.xlu0 %v256, 112
        %v258 = vpop.permute.xlu0 %257
        %vm259 = vcmask 130048
        %v261 = vsel %vm259, %v251, 0
        %v264 = vsel %vm259, %v258, 0
        %266 = vmatprep.subr.bf16.mxu0 0
        %267 = vmatpush1.bf16.xpose.msra.mxu0 %v264
        %268 = vmatprep.subr.bf16.mxu0 0
        %269 = vmatpush1.bf16.xpose.msra.mxu0 0
        %270 = vmatprep.subr.bf16.mxu0 0
        %271 = vmatpush1.bf16.xpose.msra.mxu0 0
        %272 = vmatprep.subr.bf16.mxu0 0
        %273 = vmatpush1.bf16.xpose.msra.mxu0 0
        %274 = vmatprep.subr.bf16.mxu0 0
        %275 = vmatpush1.bf16.xpose.msra.mxu0 0
        %276 = vmatprep.subr.bf16.mxu0 0
        %277 = vmatpush1.bf16.xpose.msra.mxu0 0
        %278 = vmatprep.subr.bf16.mxu0 0
        %279 = vmatpush1.bf16.xpose.msra.mxu0 0
        %280 = vmatprep.subr.bf16.mxu0 0
        %281 = vmatpush1.bf16.xpose.msra.mxu0 0
        %282 = vmatprep.subr.bf16.mxu0 0
        %283 = vmatpush1.bf16.xpose.msra.mxu0 0
        %284 = vmatprep.subr.bf16.mxu0 0
        %285 = vmatpush1.bf16.xpose.msra.mxu0 0
        %286 = vmatprep.subr.bf16.mxu0 0
        %287 = vmatpush1.bf16.xpose.msra.mxu0 0
        %288 = vmatprep.subr.bf16.mxu0 0
        %289 = vmatpush1.bf16.xpose.msra.mxu0 0
        %290 = vmatprep.subr.bf16.mxu0 0
        %291 = vmatpush1.bf16.xpose.msra.mxu0 0
        %292 = vmatprep.subr.bf16.mxu0 0
        %293 = vmatpush1.bf16.xpose.msra.mxu0 0
        %294 = vmatprep.subr.bf16.mxu0 0
        %295 = vmatpush1.bf16.xpose.msra.mxu0 0
        %296 = vmatprep.subr.bf16.mxu0 0
        %297 = vmatpush1.bf16.xpose.msra.mxu0 0
        %298 = vmatprep.mubr.bf16.mxu0 0
        %299 = vmatmul.mubr.bf16.gmra.mrb[0].mxu0 %v261
        %v300 = vpop.f32.mrb[0].mxu0
        %v301 = vadd.f32 %v253, %v300
        %v302 = vpop.f32.mrb[0].mxu0
        %v303 = vpop.f32.mrb[0].mxu0
        %v304 = vpop.f32.mrb[0].mxu0
        %305 = vdwg.mxu0
        %vm306 = vcmask 64512
        %v307 = vsel %vm306, %v301, -inf
        %308 = vmax.xlane.f32.xlu0 %v307
        %v309 = vpop.xlane.xlu0 %308
        %v310 = vsub.f32 %v301, %v309
        %v311 = vmul.f32 %v310, 1.442695
        %v312 = vpow.pop %v311
        %v313 = vsel %vm306, %v312, 0.0
        %314 = vadd.xlane.f32.xlu0 %v313
        %v315 = vpop.xlane.xlu0 %314
        %v316 = vrcp.pop %v315
        %v317 = vmul.f32 %v312, %v316
        %v318 = vpack.c.bf16 %v317, %v317
        %319 = vrot.lane.b32.xlu0 %v256, 96
        %v320 = vpop.permute.xlu0 %319
        %v322 = vsel %vm306, %v318, 0
        %vm324 = vcmask 1043456
        %v326 = vsel %vm324, %v320, 0
        %328 = vmatprep.subr.bf16.mxu0 0
        %329 = vmatpush1.bf16.msra.mxu0 %v326
        %330 = vmatprep.subr.bf16.mxu0 0
        %331 = vmatpush1.bf16.msra.mxu0 0
        %332 = vmatprep.subr.bf16.mxu0 0
        %333 = vmatpush1.bf16.msra.mxu0 0
        %334 = vmatprep.subr.bf16.mxu0 0
        %335 = vmatpush1.bf16.msra.mxu0 0
        %336 = vmatprep.subr.bf16.mxu0 0
        %337 = vmatpush1.bf16.msra.mxu0 0
        %338 = vmatprep.subr.bf16.mxu0 0
        %339 = vmatpush1.bf16.msra.mxu0 0
        %340 = vmatprep.subr.bf16.mxu0 0
        %341 = vmatpush1.bf16.msra.mxu0 0
        %342 = vmatprep.subr.bf16.mxu0 0
        %343 = vmatpush1.bf16.msra.mxu0 0
        %344 = vmatprep.subr.bf16.mxu0 0
        %345 = vmatpush1.bf16.msra.mxu0 0
        %346 = vmatprep.subr.bf16.mxu0 0
        %347 = vmatpush1.bf16.msra.mxu0 0
        %348 = vmatprep.subr.bf16.mxu0 0
        %349 = vmatpush1.bf16.msra.mxu0 0
        %350 = vmatprep.subr.bf16.mxu0 0
        %351 = vmatpush1.bf16.msra.mxu0 0
        %352 = vmatprep.subr.bf16.mxu0 0
        %353 = vmatpush1.bf16.msra.mxu0 0
        %354 = vmatprep.subr.bf16.mxu0 0
        %355 = vmatpush1.bf16.msra.mxu0 0
        %356 = vmatprep.subr.bf16.mxu0 0
        %357 = vmatpush1.bf16.msra.mxu0 0
        %358 = vmatprep.subr.bf16.mxu0 0
        %359 = vmatpush1.bf16.msra.mxu0 0
        %360 = vmatprep.mubr.bf16.mxu0 0
        %361 = vmatmul.mubr.bf16.gmra.mrb[0].mxu0 %v322
        %v362 = vpop.f32.mrb[0].mxu0
        %v363 = vadd.f32 0.0, %v362
        %v364 = vpop.f32.mrb[0].mxu0
        %v365 = vpop.f32.mrb[0].mxu0
        %v366 = vpop.f32.mrb[0].mxu0
        %367 = vdwg.mxu0
        %368 = vst.msk [vmem:[%s161] sm:$0xff] %vm259, %v363
        %s369 = sand.u32 %s93, 1
        %s370 = scalar_lea.sflag [#allocation4], %s369
        %s371 = sand.u32 %s93, 1
        %s372 = smul.addr %s371, 8
        %s373 = scalar_lea.vmem [#allocation3], %s372
        // Predicated region
        $region33: #{tpu_custom_call.1} parent=31 // pred_check
          %p374 = pneg %p103
        $region34: #{tpu_custom_call.1} parent=31 // pred_check_branch
          %376 = sbr.rel (%p374) target = $region36
        $region35: #{tpu_custom_call.1} parent=31 // pred_region
          %s378 = ssub.s32 128, 128
          %379 = vsyncadd %s370, %s378
          %s380 = smul.addr %s17, 128
          %s381 = scalar_lea.hbm %s3, %s380
          %s383 = sshll.u32 %s373, 4
          %s384 = int_to_ptr.vmem [resolvable:$true] %s383
          %386 = dma.vmem_to_hbm [thread:$0]  %s384, 128, %s381, %s370
        $region36: #{tpu_custom_call.1} parent=31 // pred_fallthru
          _
      $region32: #{tpu_custom_call.1} parent=5 // pred_fallthru
        _
      %p387 = scmp.le.s32.totalorder 2, %s12
      // Predicated region
      $region37: #{tpu_custom_call.1} parent=5 // pred_check
        %p388 = pneg %p387
      $region38: #{tpu_custom_call.1} parent=5 // pred_check_branch
        %390 = sbr.rel (%p388) target = $region40
      $region39: #{tpu_custom_call.1} parent=5 // pred_region
        %s391 = ssub.s32 %s12, 2
        // Predicated region
        $region41: #{tpu_custom_call.1} parent=39 // pred_check
          %p392 = pneg %p109
        $region42: #{tpu_custom_call.1} parent=39 // pred_check_branch
          %394 = sbr.rel (%p392) target = $region44
        $region43: #{tpu_custom_call.1} parent=39 // pred_region
          %s395 = sand.u32 %s94, 1
          %s396 = scalar_lea.sflag [#allocation4], %s395
          %s397 = sand.u32 %s94, 1
          %s398 = smul.addr %s397, 8
          %s399 = scalar_lea.vmem [#allocation3], %s398
          %400 = dma.done %s396, 128
        $region44: #{tpu_custom_call.1} parent=39 // pred_fallthru
          _
      $region40: #{tpu_custom_call.1} parent=5 // pred_fallthru
        _
    $region6: #{tpu_custom_call.1} parent=1 // loop_footer
      %s16 = sadd.s32 1, %s12
    $region7: #{tpu_custom_call.1} parent=1 // loop_footer_branch
      %11 = sbr.rel target = $region3
    $region8: #{tpu_custom_call.1} parent=1 // loop_exit
      _
    %401 = vsyncpa [#allocation4], 1
    %s402 = scalar_lea.sflag [#allocation4], 1
    %403 = vsyncpa %s402, 1

</llo_original>
